<compile_context>
chip_gen: v6e
topology: v6e:2x2x1
jax: 0.10.0
libtpu: 0.0.40
codegen_flags: <defaults>
</compile_context>

<pallas_src>
import math
from functools import partial

import numpy as np
import jax
import jax.numpy as jnp
from jax.experimental import pallas as pl
from jax.experimental.pallas import tpu as pltpu


def _srelu_kernel(x_ref, tr_ref, tl_ref, ar_ref, al_ref, o_ref, *, exact):
    f32 = jnp.float32
    x = x_ref[...].astype(f32)            # (TILE_R, LANES)
    tr = tr_ref[...].astype(f32)          # (1, LANES) — broadcasts over rows
    tl = tl_ref[...].astype(f32)
    ar = ar_ref[...].astype(f32)
    al = al_ref[...].astype(f32)

    right = tr + ar * (x + tr)            # note: x + tr, exactly as the module
    left = tl + al * (x + tl)

    if exact:
        # Matches the PyTorch mask-multiply form exactly for finite inputs,
        # including the tr <= tl overlap region where two branches sum.
        mid = jnp.logical_and(x < tr, x > tl)
        out = (jnp.where(x >= tr, right, 0.0)
               + jnp.where(mid, x, 0.0)
               + jnp.where(x <= tl, left, 0.0))
    else:
        # ~10 VALU ops/element (v7x-friendly); differs from the module only
        # when tr <= tl overlap occurs or with non-finite params.
        out = jnp.where(x >= tr, right, jnp.where(x <= tl, left, x))

    o_ref[...] = out.astype(o_ref.dtype)


def _choose_lanes(w):
    # Smallest lane width that is a multiple of both W (so the (W,) params
    # tile along lanes) and 128 (unmasked, lane-dense vst).
    return (w * 128) // math.gcd(w, 128)


def _sublane(dtype):
    # Native sublane tile: 8 rows for 4-byte, 16 for 2-byte, 32 for 1-byte.
    return 8 * (4 // jnp.dtype(dtype).itemsize)


def _pick_tile_r(rows, bytes_per_row, sublane):
    budget = 4 << 20                      # ~4 MiB per pipeline buffer
    cap = max(sublane, (budget // max(bytes_per_row, 1)) // sublane * sublane)
    # Keep >= ~8 grid steps on large inputs so both v7x TensorCores stream.
    if rows > 8 * sublane:
        cap = min(cap, max(sublane, (rows // 8) // sublane * sublane))
    if rows <= cap:
        return rows                       # single / full block
    # Prefer the largest sublane-multiple divisor of rows <= cap (no ragged
    # last block); otherwise fall back to cap (Pallas masks the partial block).
    t = cap
    while t >= sublane:
        if rows % t == 0:
            return t
        t -= sublane
    return cap


@partial(jax.jit, static_argnames=("exact",))
def srelu_pallas(x, tr, tl, ar, al, exact=True):
    """x: (..., W) float; tr/tl/ar/al: (W,). Returns array with x's shape/dtype."""
    orig_shape = x.shape
    dtype = x.dtype
    w = orig_shape[-1]
    total = x.size

    # Fold everything onto a (rows, lanes) slab with a 128-dense lane axis.
    lanes = _choose_lanes(w)
    rows = pl.cdiv(total, lanes)
    padded_total = rows * lanes
    reps = lanes // w

    x_flat = x.reshape(-1)
    if padded_total != total:
        # Zero-pad so the lane axis stays a multiple of 128; since both
        # `total` and `lanes` are multiples of W, real data always starts on
        # a W boundary and the parameter pattern is preserved. The padded
        # tail computes garbage that is sliced off below.
        x_flat = jnp.pad(x_flat, (0, padded_total - total))
    x2 = x_flat.reshape(rows, lanes)

    def prep(p):
        return jnp.tile(p.astype(dtype), reps).reshape(1, lanes)

    tr2, tl2, ar2, al2 = prep(tr), prep(tl), prep(ar), prep(al)

    sub = _sublane(dtype)
    bytes_per_row = lanes * jnp.dtype(dtype).itemsize
    tile_r = _pick_tile_r(rows, bytes_per_row, sub)
    grid = (pl.cdiv(rows, tile_r),)

    x_spec = pl.BlockSpec((tile_r, lanes), lambda i: (i, 0))
    p_spec = pl.BlockSpec((1, lanes), lambda i: (0, 0))   # params stay resident

    out2 = pl.pallas_call(
        partial(_srelu_kernel, exact=exact),
        out_shape=jax.ShapeDtypeStruct((rows, lanes), dtype),
        grid=grid,
        in_specs=[x_spec, p_spec, p_spec, p_spec, p_spec],
        out_specs=x_spec,
        input_output_aliases={0: 0},      # output reuses x2's HBM buffer
        compiler_params=pltpu.CompilerParams(
            dimension_semantics=("parallel",),
            vmem_limit_bytes=32 << 20),
    )(x2, tr2, tl2, ar2, al2)

    out_flat = out2.reshape(-1)
    if padded_total != total:
        out_flat = out_flat[:total]
    return out_flat.reshape(orig_shape)


def srelu_ref(x, tr, tl, ar, al):
    """Plain-JAX reference mirroring the PyTorch forward exactly."""
    ge_r = (x >= tr).astype(x.dtype)
    lt_r = (x < tr).astype(x.dtype)
    gt_l = (x > tl).astype(x.dtype)
    le_l = (x <= tl).astype(x.dtype)
    return (ge_r * (tr + ar * (x + tr))
            + lt_r * gt_l * x
            + le_l * (tl + al * (x + tl)))


if __name__ == "__main__":
    key = jax.random.PRNGKey(0)
    kx, ktr, ktl, kar, kal = jax.random.split(key, 5)

    N, C, H, W = 2, 4, 16, 16            # in_features = W = 16
    x = jax.random.normal(kx, (N, C, H, W), dtype=jnp.float32)
    tr = jax.random.normal(ktr, (W,), dtype=jnp.float32)
    tl = jax.random.normal(ktl, (W,), dtype=jnp.float32)
    ar = jax.random.normal(kar, (W,), dtype=jnp.float32)
    al = jax.random.normal(kal, (W,), dtype=jnp.float32)

    out = jax.block_until_ready(srelu_pallas(x, tr, tl, ar, al))

    ref = srelu_ref(x, tr, tl, ar, al)
    np.testing.assert_allclose(np.asarray(out), np.asarray(ref),
                               rtol=1e-6, atol=1e-6)
    print("KERNEL_OK")
</pallas_src>

<mosaic_0001>
module attributes {stable_mosaic.version = 11 : i64} {
  func.func @_srelu_kernel(%arg0: i32, %arg1: memref<16x128xf32, #tpu.memory_space<vmem>>, %arg2: memref<1x128xf32, #tpu.memory_space<vmem>>, %arg3: memref<1x128xf32, #tpu.memory_space<vmem>>, %arg4: memref<1x128xf32, #tpu.memory_space<vmem>>, %arg5: memref<1x128xf32, #tpu.memory_space<vmem>>, %arg6: memref<16x128xf32, #tpu.memory_space<vmem>>) attributes {dimension_semantics = [#tpu.dimension_semantics<parallel>], iteration_bounds = array<i64: 1>, scalar_prefetch = 0 : i64, scratch_operands = 0 : i64, tpu.core_type = #tpu.core_type<tc>, window_params = [{transform_indices = @transform_0, window_bounds = array<i64: 16, 128>}, {pipeline_mode = #tpu.pipeline_mode<synchronous>, transform_indices = @transform_1, window_bounds = array<i64: 1, 128>}, {pipeline_mode = #tpu.pipeline_mode<synchronous>, transform_indices = @transform_2, window_bounds = array<i64: 1, 128>}, {pipeline_mode = #tpu.pipeline_mode<synchronous>, transform_indices = @transform_3, window_bounds = array<i64: 1, 128>}, {pipeline_mode = #tpu.pipeline_mode<synchronous>, transform_indices = @transform_4, window_bounds = array<i64: 1, 128>}, {transform_indices = @transform_5, window_bounds = array<i64: 16, 128>}]} {
    %c0 = arith.constant 0 : index
    %c0_0 = arith.constant 0 : index
    %0 = vector.load %arg1[%c0, %c0_0] : memref<16x128xf32, #tpu.memory_space<vmem>>, vector<16x128xf32>
    %c0_1 = arith.constant 0 : index
    %c0_2 = arith.constant 0 : index
    %1 = vector.load %arg2[%c0_1, %c0_2] : memref<1x128xf32, #tpu.memory_space<vmem>>, vector<1x128xf32>
    %c0_3 = arith.constant 0 : index
    %c0_4 = arith.constant 0 : index
    %2 = vector.load %arg3[%c0_3, %c0_4] : memref<1x128xf32, #tpu.memory_space<vmem>>, vector<1x128xf32>
    %c0_5 = arith.constant 0 : index
    %c0_6 = arith.constant 0 : index
    %3 = vector.load %arg4[%c0_5, %c0_6] : memref<1x128xf32, #tpu.memory_space<vmem>>, vector<1x128xf32>
    %c0_7 = arith.constant 0 : index
    %c0_8 = arith.constant 0 : index
    %4 = vector.load %arg5[%c0_7, %c0_8] : memref<1x128xf32, #tpu.memory_space<vmem>>, vector<1x128xf32>
    %5 = vector.broadcast %1 : vector<1x128xf32> to vector<16x128xf32>
    %6 = arith.addf %0, %5 : vector<16x128xf32>
    %7 = vector.broadcast %3 : vector<1x128xf32> to vector<16x128xf32>
    %8 = arith.mulf %7, %6 : vector<16x128xf32>
    %9 = vector.broadcast %1 : vector<1x128xf32> to vector<16x128xf32>
    %10 = arith.addf %9, %8 : vector<16x128xf32>
    %11 = vector.broadcast %2 : vector<1x128xf32> to vector<16x128xf32>
    %12 = arith.addf %0, %11 : vector<16x128xf32>
    %13 = vector.broadcast %4 : vector<1x128xf32> to vector<16x128xf32>
    %14 = arith.mulf %13, %12 : vector<16x128xf32>
    %15 = vector.broadcast %2 : vector<1x128xf32> to vector<16x128xf32>
    %16 = arith.addf %15, %14 : vector<16x128xf32>
    %17 = vector.broadcast %1 : vector<1x128xf32> to vector<16x128xf32>
    %18 = arith.cmpf olt, %0, %17 : vector<16x128xf32>
    %19 = vector.broadcast %2 : vector<1x128xf32> to vector<16x128xf32>
    %20 = arith.cmpf ogt, %0, %19 : vector<16x128xf32>
    %21 = arith.andi %18, %20 : vector<16x128xi1>
    %22 = vector.broadcast %1 : vector<1x128xf32> to vector<16x128xf32>
    %23 = arith.cmpf oge, %0, %22 : vector<16x128xf32>
    %cst = arith.constant 0.000000e+00 : f32
    %24 = vector.broadcast %cst : f32 to vector<16x128xf32>
    %25 = arith.select %23, %10, %24 : vector<16x128xi1>, vector<16x128xf32>
    %cst_9 = arith.constant 0.000000e+00 : f32
    %26 = vector.broadcast %cst_9 : f32 to vector<16x128xf32>
    %27 = arith.select %21, %0, %26 : vector<16x128xi1>, vector<16x128xf32>
    %28 = arith.addf %25, %27 : vector<16x128xf32>
    %29 = vector.broadcast %2 : vector<1x128xf32> to vector<16x128xf32>
    %30 = arith.cmpf ole, %0, %29 : vector<16x128xf32>
    %cst_10 = arith.constant 0.000000e+00 : f32
    %31 = vector.broadcast %cst_10 : f32 to vector<16x128xf32>
    %32 = arith.select %30, %16, %31 : vector<16x128xi1>, vector<16x128xf32>
    %33 = arith.addf %28, %32 : vector<16x128xf32>
    %c0_11 = arith.constant 0 : index
    %c0_12 = arith.constant 0 : index
    %34 = vector.load %arg6[%c0_11, %c0_12] : memref<16x128xf32, #tpu.memory_space<vmem>>, vector<16x128xf32>
    tpu.vector_store %arg6[%c0_11, %c0_12], %33 {strides = array<i32>} : memref<16x128xf32, #tpu.memory_space<vmem>>, vector<16x128xf32>,
    return
  }
  func.func @transform_0(%arg0: i32) -> (i32, i32) {
    %c0_i32 = arith.constant 0 : i32
    %c0_i32_0 = arith.constant 0 : i32
    return %arg0, %c0_i32 : i32, i32
  }
  func.func @transform_1(%arg0: i32) -> (i32, i32) {
    %c0_i32 = arith.constant 0 : i32
    %c0_i32_0 = arith.constant 0 : i32
    %c0_i32_1 = arith.constant 0 : i32
    return %c0_i32, %c0_i32_0 : i32, i32
  }
  func.func @transform_2(%arg0: i32) -> (i32, i32) {
    %c0_i32 = arith.constant 0 : i32
    %c0_i32_0 = arith.constant 0 : i32
    %c0_i32_1 = arith.constant 0 : i32
    return %c0_i32, %c0_i32_0 : i32, i32
  }
  func.func @transform_3(%arg0: i32) -> (i32, i32) {
    %c0_i32 = arith.constant 0 : i32
    %c0_i32_0 = arith.constant 0 : i32
    %c0_i32_1 = arith.constant 0 : i32
    return %c0_i32, %c0_i32_0 : i32, i32
  }
  func.func @transform_4(%arg0: i32) -> (i32, i32) {
    %c0_i32 = arith.constant 0 : i32
    %c0_i32_0 = arith.constant 0 : i32
    %c0_i32_1 = arith.constant 0 : i32
    return %c0_i32, %c0_i32_0 : i32, i32
  }
  func.func @transform_5(%arg0: i32) -> (i32, i32) {
    %c0_i32 = arith.constant 0 : i32
    %c0_i32_0 = arith.constant 0 : i32
    return %arg0, %c0_i32 : i32, i32
  }
}

</mosaic_0001>

<llo_original>
// kernel: tile.24
$region0: #{tile.24}
  %s0 = inlined_call_operand.vmem [shape: f32[8,16], index: 0, kind: input, shape index: {}]
  %s1 = inlined_call_operand.vmem [shape: f32[1,128], index: 1, kind: output, shape index: {}]
  $region1: #{tile.24} parent=0
    #allocation0 [shape = 'u8[4096]{0}', space=vmem, size = 0x1000, scoped, tag = 'scoped mem for output reshape']
    %v2 = vld [vmem:[%s0] sm:$0x1]
    %vm3 = vcmask 130048
    %4 = vst.msk [vmem:[#allocation0] sm:$0x1] %vm3, %v2
    %s5 = scalar_lea.vmem %s0, 7
    %v6 = vld [vmem:[%s5] sm:$0x1]
    %7 = vrot.lane.b32.xlu0 %v6, 112
    %v8 = vpop.permute.xlu0 %7
    %vm9 = vcmask 1048448
    %10 = vst.msk [vmem:[#allocation0] sm:$0x1] %vm9, %v8
    %s11 = scalar_lea.vmem %s0, 6
    %v12 = vld [vmem:[%s11] sm:$0x1]
    %13 = vrot.lane.b32.xlu0 %v12, 96
    %v14 = vpop.permute.xlu0 %13
    %vm15 = vcmask 917248
    %16 = vst.msk [vmem:[#allocation0] sm:$0x1] %vm15, %v14
    %s17 = scalar_lea.vmem %s0, 5
    %v18 = vld [vmem:[%s17] sm:$0x1]
    %19 = vrot.lane.b32.xlu0 %v18, 80
    %v20 = vpop.permute.xlu0 %19
    %vm21 = vcmask 786048
    %22 = vst.msk [vmem:[#allocation0] sm:$0x1] %vm21, %v20
    %s23 = scalar_lea.vmem %s0, 4
    %v24 = vld [vmem:[%s23] sm:$0x1]
    %25 = vrot.lane.b32.xlu0 %v24, 64
    %v26 = vpop.permute.xlu0 %25
    %vm27 = vcmask 654848
    %28 = vst.msk [vmem:[#allocation0] sm:$0x1] %vm27, %v26
    %s29 = scalar_lea.vmem %s0, 3
    %v30 = vld [vmem:[%s29] sm:$0x1]
    %31 = vrot.lane.b32.xlu0 %v30, 48
    %v32 = vpop.permute.xlu0 %31
    %vm33 = vcmask 523648
    %34 = vst.msk [vmem:[#allocation0] sm:$0x1] %vm33, %v32
    %s35 = scalar_lea.vmem %s0, 2
    %v36 = vld [vmem:[%s35] sm:$0x1]
    %37 = vrot.lane.b32.xlu0 %v36, 32
    %v38 = vpop.permute.xlu0 %37
    %vm39 = vcmask 392448
    %40 = vst.msk [vmem:[#allocation0] sm:$0x1] %vm39, %v38
    %s41 = scalar_lea.vmem %s0, 1
    %v42 = vld [vmem:[%s41] sm:$0x1]
    %43 = vrot.lane.b32.xlu0 %v42, 16
    %v44 = vpop.permute.xlu0 %43
    %vm45 = vcmask 261248
    %46 = vst.msk [vmem:[#allocation0] sm:$0x1] %vm45, %v44
    %s48 = sshll.u32 1, 1
    %s49 = ssub.s32 %s48, 1
    %v51 = vld [vmem:[#allocation0] sm:%s49]
    %s52 = sshll.u32 1, 1
    %s53 = ssub.s32 %s52, 1
    %54 = vst [vmem:[%s1] sm:%s53] %v51

// kernel: tile.23
$region0: #{tile.23}
  #allocation0 [shape = 's32[1]{0}', space=sflag, size = 0x4, scoped, tag = 'scoped memory for tile.23']
  %s0 = inlined_call_operand.vmem [shape: f32[16], index: 0, kind: input, shape index: {}]
  %s1 = inlined_call_operand.vmem [shape: f32[8,16], index: 1, kind: output, shape index: {}]
  // Predicated region
  $region2: #{tile.23} parent=0 // pred_check
    _
  $region3: #{tile.23} parent=0 // pred_check_branch
    %3 = sbr.rel (0) target = $region5
  $region4: #{tile.23} parent=0 // pred_region
    _
  $region5: #{tile.23} parent=0 // pred_fallthru
    _
  %v4 = vld [vmem:[%s0] ss:$0 sm:$0xff]
  %5 = vst [vmem:[%s1] sm:$0xff] %v4

// kernel: srelu_pallas.1
$region0: #{srelu_pallas.1}
  #allocation0 [shape = 'u32[]', space=smem, size = 0x4, offset = 0x4, fixed_abs, tag = 'smem constant byte address 0x4 - core index']
  #allocation1 [shape = 'u32[144,128]{1,0:T(1,128)}', space=vmem, size = 0x12000, scoped, tag = 'internal scratch']
  %s0 = inlined_call_operand.vmem [shape: f32[16,128], index: 0, kind: input, shape index: {}, may-alias: {0,5}]
  %s1 = inlined_call_operand.vmem [shape: f32[1,128], index: 1, kind: input, shape index: {}]
  %s2 = inlined_call_operand.vmem [shape: f32[1,128], index: 2, kind: input, shape index: {}]
  %s3 = inlined_call_operand.vmem [shape: f32[1,128], index: 3, kind: input, shape index: {}]
  %s4 = inlined_call_operand.vmem [shape: f32[1,128], index: 4, kind: input, shape index: {}]
  %s5 = inlined_call_operand.vmem [shape: f32[16,128], index: 5, kind: output, shape index: {}, may-alias: {0,5}]
  %s6 = sld [smem:[#allocation0]]
  $region30: #{srelu_pallas.1} parent=0
    _
  %s8 = ssub.s32 1, %s6
  %s9 = scalar_select 0, %s8, %s6
  // Predicated region
  $region2: #{srelu_pallas.1} parent=0 // pred_check
    _
  $region3: #{srelu_pallas.1} parent=0 // pred_check_branch
    %11 = sbr.rel (0) target = $region5
  $region4: #{srelu_pallas.1} parent=0 // pred_region
    _
  $region5: #{srelu_pallas.1} parent=0 // pred_fallthru
    _
  // Predicated region
  $region6: #{srelu_pallas.1} parent=0 // pred_check
    _
  $region7: #{srelu_pallas.1} parent=0 // pred_check_branch
    %13 = sbr.rel (0) target = $region9
  $region8: #{srelu_pallas.1} parent=0 // pred_region
    _
  $region9: #{srelu_pallas.1} parent=0 // pred_fallthru
    _
  // Predicated region
  $region10: #{srelu_pallas.1} parent=0 // pred_check
    _
  $region11: #{srelu_pallas.1} parent=0 // pred_check_branch
    %15 = sbr.rel (0) target = $region13
  $region12: #{srelu_pallas.1} parent=0 // pred_region
    _
  $region13: #{srelu_pallas.1} parent=0 // pred_fallthru
    _
  // Predicated region
  $region14: #{srelu_pallas.1} parent=0 // pred_check
    _
  $region15: #{srelu_pallas.1} parent=0 // pred_check_branch
    %17 = sbr.rel (0) target = $region17
  $region16: #{srelu_pallas.1} parent=0 // pred_region
    _
  $region17: #{srelu_pallas.1} parent=0 // pred_fallthru
    _
  // Predicated region
  $region18: #{srelu_pallas.1} parent=0 // pred_check
    _
  $region19: #{srelu_pallas.1} parent=0 // pred_check_branch
    %19 = sbr.rel (0) target = $region21
  $region20: #{srelu_pallas.1} parent=0 // pred_region
    _
  $region21: #{srelu_pallas.1} parent=0 // pred_fallthru
    _
  %v20 = vld [vmem:[%s0] sm:$0xff]
  %v21 = vld [vmem:[%s0 + $0x8] sm:$0xff]
  %v22 = vld [vmem:[%s1] sm:$0x1]
  %v23 = vld [vmem:[%s2] sm:$0x1]
  %v24 = vld [vmem:[%s3] sm:$0x1]
  %v25 = vld [vmem:[%s4] sm:$0x1]
  %v27 = vlaneseq
  %v28 = vshrl.u32 %v27, 7
  %v29 = vsub.s32 0, %v28
  %v30 = vrot.slane %v22, %v29
  %v32 = vadd.f32 %v20, %v30
  %v33 = vadd.f32 %v21, %v30
  %v35 = vlaneseq
  %v36 = vshrl.u32 %v35, 7
  %v37 = vsub.s32 0, %v36
  %v38 = vrot.slane %v24, %v37
  %v40 = vmul.f32 %v38, %v32
  %v41 = vmul.f32 %v38, %v33
  %v42 = vadd.f32 %v30, %v40
  %v43 = vadd.f32 %v30, %v41
  %v45 = vlaneseq
  %v46 = vshrl.u32 %v45, 7
  %v47 = vsub.s32 0, %v46
  %v48 = vrot.slane %v23, %v47
  %v50 = vadd.f32 %v20, %v48
  %v51 = vadd.f32 %v21, %v48
  %v53 = vlaneseq
  %v54 = vshrl.u32 %v53, 7
  %v55 = vsub.s32 0, %v54
  %v56 = vrot.slane %v25, %v55
  %v58 = vmul.f32 %v56, %v50
  %v59 = vmul.f32 %v56, %v51
  %v60 = vadd.f32 %v48, %v58
  %v61 = vadd.f32 %v48, %v59
  %vm62 = vcmp.lt.f32.partialorder %v20, %v30
  %vm63 = vcmp.lt.f32.partialorder %v21, %v30
  %vm64 = vcmp.gt.f32.partialorder %v20, %v48
  %vm65 = vcmp.gt.f32.partialorder %v21, %v48
  %vm66 = vmand %vm62, %vm64
  %vm67 = vmand %vm63, %vm65
  %vm68 = vcmp.ge.f32.partialorder %v20, %v30
  %vm69 = vcmp.ge.f32.partialorder %v21, %v30
  %v70 = vsel %vm68, %v42, 0.0
  %v71 = vsel %vm69, %v43, 0.0
  %v72 = vsel %vm66, %v20, 0.0
  %v73 = vsel %vm67, %v21, 0.0
  %v74 = vadd.f32 %v70, %v72
  %v75 = vadd.f32 %v71, %v73
  %vm76 = vcmp.le.f32.partialorder %v20, %v48
  %vm77 = vcmp.le.f32.partialorder %v21, %v48
  %v78 = vsel %vm76, %v60, 0.0
  %v79 = vsel %vm77, %v61, 0.0
  %v80 = vadd.f32 %v74, %v78
  %v81 = vadd.f32 %v75, %v79
  %82 = vst [vmem:[%s5] sm:$0xff] %v80
  %83 = vst [vmem:[%s5 + $0x8] sm:$0xff] %v81
  // Predicated region
  $region22: #{srelu_pallas.1} parent=0 // pred_check
    _
  $region23: #{srelu_pallas.1} parent=0 // pred_check_branch
    %85 = sbr.rel (0) target = $region25
  $region24: #{srelu_pallas.1} parent=0 // pred_region
    _
  $region25: #{srelu_pallas.1} parent=0 // pred_fallthru
    _
  // Predicated region
  $region26: #{srelu_pallas.1} parent=0 // pred_check
    _
  $region27: #{srelu_pallas.1} parent=0 // pred_check_branch
    %87 = sbr.rel (0) target = $region29
  $region28: #{srelu_pallas.1} parent=0 // pred_region
    _
  $region29: #{srelu_pallas.1} parent=0 // pred_fallthru
    _

</llo_original>
